<compile_context>
chip_gen: v6e
topology: v6e:2x2x1
jax: 0.10.0
libtpu: 0.0.40
codegen_flags: <defaults>
</compile_context>

<pallas_src>
import functools

import jax
import jax.numpy as jnp
from jax.experimental import pallas as pl
from jax.experimental.pallas import tpu as pltpu

_LANE = 1024          # lane-dense slab width (multiple of 128)
_TILE_ROWS = 512      # 512 * 1024 * 4B = 2 MiB per f32 buffer


def _noise_kernel(x_ref, bits_ref, o_ref, *, noise_amount):
    bits = bits_ref[...]                       # (R, L) uint32, one per output
    half = bits.shape[-1] // 2                 # split along lanes (L % 256 == 0)

    # Two uniform draws in (0, 1), 23-bit mantissa precision, strictly > 0.
    inv = jnp.float32(1.0 / (1 << 23))
    u1 = ((bits[:, :half] >> 9).astype(jnp.int32).astype(jnp.float32) + 0.5) * inv
    u2 = ((bits[:, half:] >> 9).astype(jnp.int32).astype(jnp.float32) + 0.5) * inv

    # Box-Muller, using BOTH outputs: one (u1, u2) pair -> two N(0,1) samples.
    r = jnp.sqrt(-2.0 * jnp.log(u1))
    theta = (2.0 * jnp.float32(jnp.pi)) * u2
    z = jnp.concatenate([r * jnp.cos(theta), r * jnp.sin(theta)], axis=-1)

    o_ref[...] = x_ref[...] + (jnp.float32(noise_amount) * z).astype(o_ref.dtype)


def noise_layer_forward(x, key, noise_amount):
    """x: float array of any shape.  Returns x + noise_amount * N(0,1) noise."""
    orig_shape = x.shape
    total = x.size

    # Lane-dense slab: (rows, _LANE), padded so the grid tiles it exactly.
    rows = pl.cdiv(total, _LANE)
    tile_rows = _TILE_ROWS if rows >= _TILE_ROWS else rows
    padded_rows = pl.cdiv(rows, tile_rows) * tile_rows
    padded_total = padded_rows * _LANE

    xf = jnp.ravel(x)
    if padded_total != total:
        xf = jnp.pad(xf, (0, padded_total - total))
    x2d = xf.reshape(padded_rows, _LANE)

    # One uint32 of entropy per output element (two uniforms -> two normals).
    bits = jax.random.bits(key, (padded_rows, _LANE), dtype=jnp.uint32)

    grid = (padded_rows // tile_rows,)
    kernel = functools.partial(_noise_kernel, noise_amount=float(noise_amount))

    out2d = pl.pallas_call(
        kernel,
        out_shape=jax.ShapeDtypeStruct((padded_rows, _LANE), x.dtype),
        grid=grid,
        in_specs=[
            pl.BlockSpec((tile_rows, _LANE), lambda i: (i, 0)),
            pl.BlockSpec((tile_rows, _LANE), lambda i: (i, 0)),
        ],
        out_specs=pl.BlockSpec((tile_rows, _LANE), lambda i: (i, 0)),
        compiler_params=pltpu.CompilerParams(
            dimension_semantics=("parallel",),  # tiles are independent
        ),
        cost_estimate=pl.CostEstimate(
            flops=10 * padded_total,
            transcendentals=2 * padded_total,   # (log+sqrt+cos+sin) / 2 elems
            bytes_accessed=12 * padded_total,   # x + bits in, out
        ),
    )(x2d, bits)

    return out2d.reshape(-1)[:total].reshape(orig_shape)


if __name__ == "__main__":
    key = jax.random.PRNGKey(0)
    kx, knoise = jax.random.split(key)

    # Small NCHW input consistent with the module's usage on image tensors.
    x = jax.random.normal(kx, (2, 4, 16, 16), dtype=jnp.float32)
    noise_amount = 0.5

    out = noise_layer_forward(x, knoise, noise_amount)
    out = jax.block_until_ready(out)

    assert out.shape == x.shape and out.dtype == x.dtype

    # Sanity: residual noise should have roughly the requested std, zero mean.
    resid = out - x
    std = float(jnp.std(resid))
    mean = float(jnp.mean(resid))
    assert abs(std - noise_amount) < 0.1, f"noise std off: {std}"
    assert abs(mean) < 0.1, f"noise mean off: {mean}"

    print("KERNEL_OK")
</pallas_src>

<mosaic_0001>
module attributes {stable_mosaic.version = 11 : i64} {
  func.func @_noise_kernel(%arg0: i32, %arg1: memref<2x1024xf32, #tpu.memory_space<vmem>>, %arg2: memref<2x1024xi32, #tpu.memory_space<vmem>>, %arg3: memref<2x1024xf32, #tpu.memory_space<vmem>>) attributes {dimension_semantics = [#tpu.dimension_semantics<parallel>], iteration_bounds = array<i64: 1>, scalar_prefetch = 0 : i64, scratch_operands = 0 : i64, tpu.core_type = #tpu.core_type<tc>, window_params = [{transform_indices = @transform_0, window_bounds = array<i64: 2, 1024>}, {transform_indices = @transform_1, window_bounds = array<i64: 2, 1024>}, {transform_indices = @transform_2, window_bounds = array<i64: 2, 1024>}]} {
    %c0 = arith.constant 0 : index
    %c0_0 = arith.constant 0 : index
    %0 = vector.load %arg2[%c0, %c0_0] : memref<2x1024xi32, #tpu.memory_space<vmem>>, vector<2x1024xi32>
    %1 = vector.extract_strided_slice %0 {offsets = [0, 0], sizes = [2, 512], strides = [1, 1]} : vector<2x1024xi32> to vector<2x512xi32>
    %c9_i32 = arith.constant 9 : i32
    %2 = vector.broadcast %c9_i32 : i32 to vector<2x512xi32>
    %3 = arith.shrui %1, %2 : vector<2x512xi32>
    %4 = arith.sitofp %3 : vector<2x512xi32> to vector<2x512xf32>
    %cst = arith.constant 5.000000e-01 : f32
    %5 = vector.broadcast %cst : f32 to vector<2x512xf32>
    %6 = arith.addf %4, %5 : vector<2x512xf32>
    %cst_1 = arith.constant 1.1920929E-7 : f32
    %7 = vector.broadcast %cst_1 : f32 to vector<2x512xf32>
    %8 = arith.mulf %6, %7 : vector<2x512xf32>
    %9 = vector.extract_strided_slice %0 {offsets = [0, 512], sizes = [2, 512], strides = [1, 1]} : vector<2x1024xi32> to vector<2x512xi32>
    %c9_i32_2 = arith.constant 9 : i32
    %10 = vector.broadcast %c9_i32_2 : i32 to vector<2x512xi32>
    %11 = arith.shrui %9, %10 : vector<2x512xi32>
    %12 = arith.sitofp %11 : vector<2x512xi32> to vector<2x512xf32>
    %cst_3 = arith.constant 5.000000e-01 : f32
    %13 = vector.broadcast %cst_3 : f32 to vector<2x512xf32>
    %14 = arith.addf %12, %13 : vector<2x512xf32>
    %cst_4 = arith.constant 1.1920929E-7 : f32
    %15 = vector.broadcast %cst_4 : f32 to vector<2x512xf32>
    %16 = arith.mulf %14, %15 : vector<2x512xf32>
    %17 = math.log %8 : vector<2x512xf32>
    %cst_5 = arith.constant -2.000000e+00 : f32
    %18 = vector.broadcast %cst_5 : f32 to vector<2x512xf32>
    %19 = arith.mulf %18, %17 : vector<2x512xf32>
    %20 = math.sqrt %19 : vector<2x512xf32>
    %cst_6 = arith.constant 2.000000e+00 : f32
    %cst_7 = arith.constant 3.14159274 : f32
    %21 = arith.mulf %cst_6, %cst_7 : f32
    %22 = vector.broadcast %21 : f32 to vector<2x512xf32>
    %23 = arith.mulf %22, %16 : vector<2x512xf32>
    %24 = math.cos %23 : vector<2x512xf32>
    %25 = arith.mulf %20, %24 : vector<2x512xf32>
    %26 = math.sin %23 : vector<2x512xf32>
    %27 = arith.mulf %20, %26 : vector<2x512xf32>
    %28 = tpu.concatenate %25, %27 in 1 : vector<2x512xf32>, vector<2x512xf32> -> vector<2x1024xf32>
    %c0_8 = arith.constant 0 : index
    %c0_9 = arith.constant 0 : index
    %29 = vector.load %arg1[%c0_8, %c0_9] : memref<2x1024xf32, #tpu.memory_space<vmem>>, vector<2x1024xf32>
    %cst_10 = arith.constant 5.000000e-01 : f32
    %30 = vector.broadcast %cst_10 : f32 to vector<2x1024xf32>
    %31 = arith.mulf %30, %28 : vector<2x1024xf32>
    %32 = arith.addf %29, %31 : vector<2x1024xf32>
    %c0_11 = arith.constant 0 : index
    %c0_12 = arith.constant 0 : index
    %33 = vector.load %arg3[%c0_11, %c0_12] : memref<2x1024xf32, #tpu.memory_space<vmem>>, vector<2x1024xf32>
    tpu.vector_store %arg3[%c0_11, %c0_12], %32 {strides = array<i32>} : memref<2x1024xf32, #tpu.memory_space<vmem>>, vector<2x1024xf32>,
    return
  }
  func.func @transform_0(%arg0: i32) -> (i32, i32) {
    %c0_i32 = arith.constant 0 : i32
    %c0_i32_0 = arith.constant 0 : i32
    return %arg0, %c0_i32 : i32, i32
  }
  func.func @transform_1(%arg0: i32) -> (i32, i32) {
    %c0_i32 = arith.constant 0 : i32
    %c0_i32_0 = arith.constant 0 : i32
    return %arg0, %c0_i32 : i32, i32
  }
  func.func @transform_2(%arg0: i32) -> (i32, i32) {
    %c0_i32 = arith.constant 0 : i32
    %c0_i32_0 = arith.constant 0 : i32
    return %arg0, %c0_i32 : i32, i32
  }
}

</mosaic_0001>

<llo_original>
// kernel: tpu_custom_call.1
$region0: #{tpu_custom_call.1}
  #allocation0 [shape = 'u32[]', space=smem, size = 0x4, offset = 0x4, fixed_abs, tag = 'smem constant byte address 0x4 - core index']
  #allocation1 [shape = 'u32[144,128]{1,0:T(1,128)}', space=vmem, size = 0x12000, scoped, tag = 'internal scratch']
  %s0 = inlined_call_operand.hbm [shape: f32[2,1024], index: 0, kind: input, shape index: {}]
  %s1 = inlined_call_operand.hbm [shape: u32[2,1024], index: 1, kind: input, shape index: {}]
  %s2 = inlined_call_operand.hbm [shape: f32[2,1024], index: 2, kind: output, shape index: {}]
  %s3 = sld [smem:[#allocation0]]
  $region26: #{tpu_custom_call.1} parent=0
    _
  %s5 = ssub.s32 1, %s3
  %s6 = scalar_select 0, %s5, %s3
  $region1: #{tpu_custom_call.1} parent=0
    #allocation2 [shape = 'u8[8192]{0}', space=vmem, size = 0x2000, scoped, tag = 'input window, operand 0, single buffered']
    #allocation3 [shape = 's32[1]{0}', space=sflag, size = 0x4, scoped, tag = 'scoped memory for tpu_custom_call.1']
    #allocation4 [shape = 's32[1]{0}', space=sflag, size = 0x4, scoped, tag = 'scoped memory for tpu_custom_call.1']
    #allocation5 [shape = 'u8[8192]{0}', space=vmem, size = 0x2000, scoped, tag = 'input window, operand 1, single buffered']
    #allocation6 [shape = 's32[1]{0}', space=sflag, size = 0x4, scoped, tag = 'scoped memory for tpu_custom_call.1']
    #allocation7 [shape = 'u8[8192]{0}', space=vmem, size = 0x2000, scoped, tag = 'output window, operand 0, single buffered']
    %7 = vsyncpa [#allocation3], 0
    %8 = vsyncpa [#allocation6], 0
    %9 = vsyncpa [#allocation4], 0
    // Predicated region
    $region2: #{tpu_custom_call.1} parent=1 // pred_check
      _
    $region3: #{tpu_custom_call.1} parent=1 // pred_check_branch
      %11 = sbr.rel (0) target = $region5
    $region4: #{tpu_custom_call.1} parent=1 // pred_region
      %s13 = ssub.s32 256, 256
      %14 = vsyncadd [#allocation3], %s13
      %s16 = sshll.u32 [#allocation2], 4
      %s17 = int_to_ptr.vmem [resolvable:$true] %s16
      %19 = dma.hbm_to_vmem [thread:$0]  %s0, 256, %s17, [#allocation3]
    $region5: #{tpu_custom_call.1} parent=1 // pred_fallthru
      _
    // Predicated region
    $region6: #{tpu_custom_call.1} parent=1 // pred_check
      _
    $region7: #{tpu_custom_call.1} parent=1 // pred_check_branch
      %21 = sbr.rel (0) target = $region9
    $region8: #{tpu_custom_call.1} parent=1 // pred_region
      %s23 = ssub.s32 256, 256
      %24 = vsyncadd [#allocation6], %s23
      %s26 = sshll.u32 [#allocation5], 4
      %s27 = int_to_ptr.vmem [resolvable:$true] %s26
      %29 = dma.hbm_to_vmem [thread:$0]  %s1, 256, %s27, [#allocation6]
    $region9: #{tpu_custom_call.1} parent=1 // pred_fallthru
      _
    // Predicated region
    $region10: #{tpu_custom_call.1} parent=1 // pred_check
      _
    $region11: #{tpu_custom_call.1} parent=1 // pred_check_branch
      %31 = sbr.rel (0) target = $region13
    $region12: #{tpu_custom_call.1} parent=1 // pred_region
      %32 = dma.done [#allocation3], 256
    $region13: #{tpu_custom_call.1} parent=1 // pred_fallthru
      _
    // Predicated region
    $region14: #{tpu_custom_call.1} parent=1 // pred_check
      _
    $region15: #{tpu_custom_call.1} parent=1 // pred_check_branch
      %34 = sbr.rel (0) target = $region17
    $region16: #{tpu_custom_call.1} parent=1 // pred_region
      %35 = dma.done [#allocation6], 256
    $region17: #{tpu_custom_call.1} parent=1 // pred_fallthru
      _
    %v36 = vld [vmem:[#allocation5] sm:$0xff]
    %v37 = vld [vmem:[#allocation5 + $0x8] sm:$0xff]
    %v38 = vshrl.u32 %v36, 9
    %v39 = vcvt.s32.f32 %v38
    %v40 = vadd.f32 %v39, 0.5
    %v41 = vmul.f32 %v40, 1.1920929e-07
    %v42 = vshrl.u32 %v37, 9
    %v43 = vcvt.s32.f32 %v42
    %v44 = vadd.f32 %v43, 0.5
    %v45 = vmul.f32 %v44, 1.1920929e-07
    %v46 = vlog2.pop %v41
    %v47 = vmul.f32 %v46, 0.6931472
    %v48 = vmul.f32 %v47, -2.0
    %v49 = vrsqrt.pop %v48
    %v50 = vmul.f32 %v48, %v49
    %vm51 = vcmp.eq.f32.partialorder %v48, inf
    %v52 = vsel %vm51, %v48, %v50
    %vm53 = vcmp.eq.f32.partialorder %v48, 0.0
    %v54 = vand.u32 %v48, 2147483648
    %v55 = vsel %vm53, %v54, %v52
    %v56 = vmul.f32 %v45, 6.2831855
    %v57 = vand.u32 2147483647, %v56
    %vm58 = vcmp.le.f32.partialorder %v57, 0.7853982
    %vm59 = vcmp.lt.s32.totalorder %v56, 0
    %v60 = vand.u32 %v56, 2139095040
    %v61 = vshrl.u32 %v60, 23
    %v62 = vsub.s32 %v61, 127
    %v63 = vand.u32 2147483647, %v56
    %v64 = vand.u32 %v63, 8388607
    %v65 = vor.u32 %v64, 8388608
    %v66 = vsub.s32 0, %v65
    %v67 = vadd.s32 %v62, 1
    %vm68 = vcmp.gt.s32.totalorder %v67, 0
    %v69 = vsel %vm68, %v67, 0
    %v70 = vshrl.u32 %v69, 5
    %v71 = vand.u32 %v69, 31
    %v72 = vsub.s32 32, %v71
    %v73 = vshrl.u32 683565275, %v72
    %v74 = vshll.u32 683565275, %v71
    %v75 = vshrl.u32 2475754826, %v72
    %v76 = vor.u32 %v74, %v75
    %v77 = vshll.u32 2475754826, %v71
    %v78 = vshrl.u32 2131351028, %v72
    %v79 = vor.u32 %v77, %v78
    %v80 = vshll.u32 2131351028, %v71
    %v81 = vshrl.u32 2102212464, %v72
    %v82 = vor.u32 %v80, %v81
    %v83 = vshll.u32 2102212464, %v71
    %v84 = vshrl.u32 920167782, %v72
    %v85 = vor.u32 %v83, %v84
    %v86 = vshll.u32 920167782, %v71
    %v87 = vshrl.u32 1326507024, %v72
    %v88 = vor.u32 %v86, %v87
    %vm89 = vcmp.lt.s32.totalorder %v70, 1
    %vm90 = vcmp.lt.s32.totalorder %v70, 2
    %vm91 = vcmp.lt.s32.totalorder %v70, 3
    %vm92 = vcmp.lt.s32.totalorder %v70, 4
    %v93 = vsel %vm89, %v73, %v76
    %v94 = vsel %vm92, %v82, 2102212464
    %v95 = vsel %vm91, %v79, %v94
    %v96 = vsel %vm90, %v93, %v95
    %v97 = vsel %vm89, %v76, %v79
    %v98 = vsel %vm92, %v85, 920167782
    %v99 = vsel %vm91, %v82, %v98
    %v100 = vsel %vm90, %v97, %v99
    %v101 = vsel %vm89, %v79, %v82
    %v102 = vsel %vm92, %v88, 1326507024
    %v103 = vsel %vm91, %v85, %v102
    %v104 = vsel %vm90, %v101, %v103
    %v105 = vshll.u32 %v65, 8
    %v106 = vmul.u32.u64.compose %v105, %v104
    %v107 = vextract.low.u32 %v106
    %v108 = vextract.high.u32 %v106
    %v109 = vmul.u32.u64.compose %v105, %v100
    %v110 = vextract.low.u32 %v109
    %v111 = vextract.high.u32 %v109
    %v112 = vmul.u32 %v105, %v96
    %v113 = vadd.s32 %v108, %v110
    %vm114 = vc.u32 %v108, %v110
    %v115 = vadd.s32 %v111, 1
    %v116 = vsel %vm114, %v115, %v111
    %v117 = vadd.s32 %v112, %v116
    %v118 = vadd.s32 %v117, 536870912
    %v119 = vshrl.u32 %v118, 30
    %v120 = vshll.u32 %v119, 30
    %v121 = vsub.s32 %v117, %v120
    %vm122 = vcmp.lt.s32.totalorder %v121, 0
    %v123 = vsub.s32 0, %v121
    %v124 = vsel %vm122, %v123, %v121
    %v125 = vclz %v124
    %v126 = vsub.s32 %v125, 2
    %vm127 = vcmp.gt.s32.totalorder 0, %v126
    %v128 = vsel %vm127, 0, %v126
    %v129 = vsub.s32 32, %v128
    %v130 = vshll.u32 %v121, %v128
    %v131 = vshrl.u32 %v113, %v129
    %v132 = vor.u32 %v130, %v131
    %v133 = vsub.s32 4294967266, %v128
    %v134 = vadd.s32 %v133, 127
    %v135 = vshll.u32 %v134, 23
    %v136 = vor.u32 4788187, %v135
    %v137 = vand.u32 2147483647, %v136
    %v139 = vcvt.s32.f32 %v132
    %v140 = vmul.f32 %v139, %v137
    %v141 = vxor.u32 %v140, 2147483648
    %v142 = vsel %vm59, %v141, %v140
    %v143 = vsub.s32 4, %v119
    %v144 = vsel %vm59, %v143, %v119
    %v145 = vsel %vm58, %v56, %v142
    %v146 = vsel %vm58, 0, %v144
    %v147 = vcosq.f32.pop %v145
    %v148 = vsinq.f32.pop %v145
    %vm149 = vweird.f32 %v56
    %v150 = vand.u32 %v146, 3
    %vm151 = vcmp.lt.s32.totalorder %v150, 2
    %vm152 = vcmp.eq.s32.totalorder %v150, 0
    %v153 = vxor.u32 %v148, 2147483648
    %v154 = vsel %vm152, %v147, %v153
    %vm155 = vcmp.eq.s32.totalorder %v150, 2
    %v156 = vxor.u32 %v147, 2147483648
    %v157 = vsel %vm155, %v156, %v148
    %v158 = vsel %vm151, %v154, %v157
    %v159 = vsel %vm149, nan, %v158
    %v160 = vmul.f32 %v55, %v159
    %v161 = vand.u32 2147483647, %v56
    %vm162 = vcmp.le.f32.partialorder %v161, 0.7853982
    %vm163 = vcmp.lt.s32.totalorder %v56, 0
    %v164 = vand.u32 %v56, 2139095040
    %v165 = vshrl.u32 %v164, 23
    %v166 = vsub.s32 %v165, 127
    %v167 = vand.u32 2147483647, %v56
    %v168 = vand.u32 %v167, 8388607
    %v169 = vor.u32 %v168, 8388608
    %v170 = vsub.s32 0, %v169
    %v171 = vadd.s32 %v166, 1
    %vm172 = vcmp.gt.s32.totalorder %v171, 0
    %v173 = vsel %vm172, %v171, 0
    %v174 = vshrl.u32 %v173, 5
    %v175 = vand.u32 %v173, 31
    %v176 = vsub.s32 32, %v175
    %v177 = vshrl.u32 683565275, %v176
    %v178 = vshll.u32 683565275, %v175
    %v179 = vshrl.u32 2475754826, %v176
    %v180 = vor.u32 %v178, %v179
    %v181 = vshll.u32 2475754826, %v175
    %v182 = vshrl.u32 2131351028, %v176
    %v183 = vor.u32 %v181, %v182
    %v184 = vshll.u32 2131351028, %v175
    %v185 = vshrl.u32 2102212464, %v176
    %v186 = vor.u32 %v184, %v185
    %v187 = vshll.u32 2102212464, %v175
    %v188 = vshrl.u32 920167782, %v176
    %v189 = vor.u32 %v187, %v188
    %v190 = vshll.u32 920167782, %v175
    %v191 = vshrl.u32 1326507024, %v176
    %v192 = vor.u32 %v190, %v191
    %vm193 = vcmp.lt.s32.totalorder %v174, 1
    %vm194 = vcmp.lt.s32.totalorder %v174, 2
    %vm195 = vcmp.lt.s32.totalorder %v174, 3
    %vm196 = vcmp.lt.s32.totalorder %v174, 4
    %v197 = vsel %vm193, %v177, %v180
    %v198 = vsel %vm196, %v186, 2102212464
    %v199 = vsel %vm195, %v183, %v198
    %v200 = vsel %vm194, %v197, %v199
    %v201 = vsel %vm193, %v180, %v183
    %v202 = vsel %vm196, %v189, 920167782
    %v203 = vsel %vm195, %v186, %v202
    %v204 = vsel %vm194, %v201, %v203
    %v205 = vsel %vm193, %v183, %v186
    %v206 = vsel %vm196, %v192, 1326507024
    %v207 = vsel %vm195, %v189, %v206
    %v208 = vsel %vm194, %v205, %v207
    %v209 = vshll.u32 %v169, 8
    %v210 = vmul.u32.u64.compose %v209, %v208
    %v211 = vextract.low.u32 %v210
    %v212 = vextract.high.u32 %v210
    %v213 = vmul.u32.u64.compose %v209, %v204
    %v214 = vextract.low.u32 %v213
    %v215 = vextract.high.u32 %v213
    %v216 = vmul.u32 %v209, %v200
    %v217 = vadd.s32 %v212, %v214
    %vm218 = vc.u32 %v212, %v214
    %v219 = vadd.s32 %v215, 1
    %v220 = vsel %vm218, %v219, %v215
    %v221 = vadd.s32 %v216, %v220
    %v222 = vadd.s32 %v221, 536870912
    %v223 = vshrl.u32 %v222, 30
    %v224 = vshll.u32 %v223, 30
    %v225 = vsub.s32 %v221, %v224
    %vm226 = vcmp.lt.s32.totalorder %v225, 0
    %v227 = vsub.s32 0, %v225
    %v228 = vsel %vm226, %v227, %v225
    %v229 = vclz %v228
    %v230 = vsub.s32 %v229, 2
    %vm231 = vcmp.gt.s32.totalorder 0, %v230
    %v232 = vsel %vm231, 0, %v230
    %v233 = vsub.s32 32, %v232
    %v234 = vshll.u32 %v225, %v232
    %v235 = vshrl.u32 %v217, %v233
    %v236 = vor.u32 %v234, %v235
    %v237 = vsub.s32 4294967266, %v232
    %v238 = vadd.s32 %v237, 127
    %v239 = vshll.u32 %v238, 23
    %v240 = vor.u32 4788187, %v239
    %v241 = vand.u32 2147483647, %v240
    %v243 = vcvt.s32.f32 %v236
    %v244 = vmul.f32 %v243, %v241
    %v245 = vxor.u32 %v244, 2147483648
    %v246 = vsel %vm163, %v245, %v244
    %v247 = vsub.s32 4, %v223
    %v248 = vsel %vm163, %v247, %v223
    %v249 = vsel %vm162, %v56, %v246
    %v250 = vsel %vm162, 0, %v248
    %v251 = vcosq.f32.pop %v249
    %v252 = vsinq.f32.pop %v249
    %vm253 = vweird.f32 %v56
    %v254 = vadd.s32 %v250, 3
    %v255 = vand.u32 %v254, 3
    %vm256 = vcmp.lt.s32.totalorder %v255, 2
    %vm257 = vcmp.eq.s32.totalorder %v255, 0
    %v258 = vxor.u32 %v252, 2147483648
    %v259 = vsel %vm257, %v251, %v258
    %vm260 = vcmp.eq.s32.totalorder %v255, 2
    %v261 = vxor.u32 %v251, 2147483648
    %v262 = vsel %vm260, %v261, %v252
    %v263 = vsel %vm256, %v259, %v262
    %v264 = vsel %vm253, nan, %v263
    %v265 = vmul.f32 %v55, %v264
    %v267 = vcombine.high %v160, %v160
    %v269 = vunpack.c.l.s4 1983009808
    %v270 = vunpack.c.0.s8 %v269
    %v271 = vlaneseq
    %v272 = vshrl.u32 %v271, 7
    %v273 = vsub.s32 %v270, %v272
    %v274 = vrot.slane %v160, %v273
    %v276 = vunpack.c.l.s4 1983009808
    %v277 = vunpack.c.0.s8 %v276
    %v278 = vlaneseq
    %v279 = vshrl.u32 %v278, 7
    %v280 = vsub.s32 %v277, %v279
    %v281 = vrot.slane %v267, %v280
    %v282 = vcombine.high %v274, %v274
    %v283 = vcombine.high %v281, %v281
    %v289 = vcombine.high %v265, %v265
    %v291 = vunpack.c.l.s4 1983009808
    %v292 = vunpack.c.0.s8 %v291
    %v293 = vlaneseq
    %v294 = vshrl.u32 %v293, 7
    %v295 = vsub.s32 %v292, %v294
    %v296 = vrot.slane %v265, %v295
    %v298 = vunpack.c.l.s4 1983009808
    %v299 = vunpack.c.0.s8 %v298
    %v300 = vlaneseq
    %v301 = vshrl.u32 %v300, 7
    %v302 = vsub.s32 %v299, %v301
    %v303 = vrot.slane %v289, %v302
    %v304 = vcombine.high %v296, %v296
    %v305 = vcombine.high %v303, %v303
    %v310 = vld [vmem:[#allocation2] sm:$0xff]
    %v311 = vld [vmem:[#allocation2 + $0x8] sm:$0xff]
    %v312 = vmul.f32 %v274, 0.5
    %v313 = vmul.f32 %v282, 0.5
    %v314 = vmul.f32 %v281, 0.5
    %v315 = vmul.f32 %v283, 0.5
    %v316 = vmul.f32 %v296, 0.5
    %v317 = vmul.f32 %v304, 0.5
    %v318 = vmul.f32 %v303, 0.5
    %v319 = vmul.f32 %v305, 0.5
    %v328 = vcombine.low %v312, %v313
    %v329 = vcombine.low %v314, %v315
    %v331 = vunpack.c.l.s4 1983009808
    %v332 = vunpack.c.0.s8 %v331
    %v333 = vlaneseq
    %v334 = vshrl.u32 %v333, 7
    %v335 = vsub.s32 %v332, %v334
    %v336 = vrot.slane %v328, %v335
    %v338 = vunpack.c.l.s4 1983009808
    %v339 = vunpack.c.0.s8 %v338
    %v340 = vlaneseq
    %v341 = vshrl.u32 %v340, 7
    %v342 = vsub.s32 %v339, %v341
    %v343 = vrot.slane %v329, %v342
    %v344 = vcombine.low %v336, %v343
    %v345 = vcombine.low %v316, %v317
    %v346 = vcombine.low %v318, %v319
    %v348 = vunpack.c.l.s4 1983009808
    %v349 = vunpack.c.0.s8 %v348
    %v350 = vlaneseq
    %v351 = vshrl.u32 %v350, 7
    %v352 = vsub.s32 %v349, %v351
    %v353 = vrot.slane %v345, %v352
    %v355 = vunpack.c.l.s4 1983009808
    %v356 = vunpack.c.0.s8 %v355
    %v357 = vlaneseq
    %v358 = vshrl.u32 %v357, 7
    %v359 = vsub.s32 %v356, %v358
    %v360 = vrot.slane %v346, %v359
    %v361 = vcombine.low %v353, %v360
    %v364 = vadd.f32 %v310, %v344
    %v365 = vadd.f32 %v311, %v361
    %366 = vst [vmem:[#allocation7] sm:$0xff] %v364
    %367 = vst [vmem:[#allocation7 + $0x8] sm:$0xff] %v365
    // Predicated region
    $region18: #{tpu_custom_call.1} parent=1 // pred_check
      _
    $region19: #{tpu_custom_call.1} parent=1 // pred_check_branch
      %369 = sbr.rel (0) target = $region21
    $region20: #{tpu_custom_call.1} parent=1 // pred_region
      %s371 = ssub.s32 256, 256
      %372 = vsyncadd [#allocation4], %s371
      %s374 = sshll.u32 [#allocation7], 4
      %s375 = int_to_ptr.vmem [resolvable:$true] %s374
      %377 = dma.vmem_to_hbm [thread:$0]  %s375, 256, %s2, [#allocation4]
    $region21: #{tpu_custom_call.1} parent=1 // pred_fallthru
      _
    // Predicated region
    $region22: #{tpu_custom_call.1} parent=1 // pred_check
      _
    $region23: #{tpu_custom_call.1} parent=1 // pred_check_branch
      %379 = sbr.rel (0) target = $region25
    $region24: #{tpu_custom_call.1} parent=1 // pred_region
      %380 = dma.done [#allocation4], 256
    $region25: #{tpu_custom_call.1} parent=1 // pred_fallthru
      _
    %381 = vsyncpa [#allocation3], 1
    %382 = vsyncpa [#allocation6], 1
    %383 = vsyncpa [#allocation4], 1

</llo_original>
